<compile_context>
chip_gen: v6e
topology: v6e:2x2x1
jax: 0.10.0
libtpu: 0.0.40
codegen_flags: <defaults>
</compile_context>

<pallas_src>
import jax
import jax.numpy as jnp
from jax import lax
from jax.experimental import pallas as pl
from jax.experimental.pallas import tpu as pltpu


_MIN_CHUNKED_BATCH = 2048      # below this: single exact block, single chunk
_NUM_CHUNKS = 8                # inner lane-chunk loop length in the chunked path
_MIN_STEP_ROWS = 16 * 1024     # floor on tile rows when forcing >= 4 grid steps
_VMEM_BYTES_PER_ROW = 2048     # worst-case VMEM held per tile row (see _choose_tiles)


def _cdiv(a, b):
    return -(-a // b)


def _vmem_capacity_bytes():
    """Physical VMEM of the attached TPU (fallback: v7x's 64 MiB, the smallest)."""
    try:
        cap = getattr(pltpu.get_tpu_info(), "vmem_capacity_bytes", None)
        if cap:
            return int(cap)
    except Exception:
        pass
    return 64 * 1024 * 1024


def _choose_tiles(n, max_tile, vmem_limit_bytes):
    """Pick (tile_rows, chunk_rows, num_grid_steps) for a batch of n rows."""
    if n < _MIN_CHUNKED_BATCH:
        # Exact single block (block shape == full array shape): no alignment or
        # partial-block handling needed for small / oddly sized batches.
        return n, n, 1

    # Worst-case VMEM bytes held per tile row (f32, (8,128) tile padding):
    #   x block (tb, 3): minor dim padded 3->128 (512 B), double-buffered ~1024 B
    #   out block (1, tb): sublane padded 1->8 (32 B),    double-buffered ~  64 B
    #   xc/h1/h2 chunk temporaries (pessimistically all chunks live)      ~ 900 B
    tb = min(max_tile, int(0.8 * vmem_limit_bytes) // _VMEM_BYTES_PER_ROW, n)
    # Keep >= ~4 grid steps once the batch is large enough: needed for
    # dimension_semantics=("parallel",) to shard across v7x's two TensorCores
    # (and for double-buffering), while keeping each step's DMA large.
    if n >= 4 * _MIN_STEP_ROWS:
        tb = min(tb, max(_MIN_STEP_ROWS, _cdiv(n, 4)))
    tb = max(1024, (tb // 1024) * 1024)   # multiple of 8*128 => chunk multiple of 128
    cb = tb // _NUM_CHUNKS
    return tb, cb, _cdiv(n, tb)


def _make_kernel(nchunks, cb):
    def kernel(x_ref, w1_ref, b1_ref, w2_ref, b2_ref, w3_ref, b3_ref, out_ref):
        w1 = w1_ref[...]            # (64, 3)
        b1 = b1_ref[...]            # (64, 1) -> broadcasts over lanes
        w2 = w2_ref[...]            # (32, 64)
        b2 = b2_ref[...]            # (32, 1)
        w3 = w3_ref[...]            # (1, 32)
        b3 = b3_ref[0, 0]           # scalar from SMEM

        # Static (trace-time) chunk loop: all offsets are compile-time constants,
        # so the sublane-sliced x loads and lane-sliced output stores lower to
        # plain static accesses, while the (64, cb)/(32, cb) intermediates stay
        # bounded at ~cb lanes instead of scaling with the whole batch tile.
        for c in range(nchunks):
            xc = x_ref[pl.ds(c * cb, cb), :]                          # (cb, 3)
            # Layer 1: contract the minor dim of BOTH operands (w1 @ xc^T) so the
            # batch lands on the 128-lane axis with no explicit transpose.
            h1 = lax.dot_general(w1, xc, (((1,), (1,)), ((), ())),
                                 preferred_element_type=jnp.float32)  # (64, cb)
            h1 = jnp.maximum(h1 + b1, 0.0)
            # Layer 2: (32, 64) @ (64, cb) -> (32, cb)
            h2 = jnp.dot(w2, h1, preferred_element_type=jnp.float32)
            h2 = jnp.maximum(h2 + b2, 0.0)
            # Layer 3: (1, 32) @ (32, cb) -> (1, cb): lane-dense output chunk.
            y = jnp.dot(w3, h2, preferred_element_type=jnp.float32)
            out_ref[:, pl.ds(c * cb, cb)] = (y + b3).astype(out_ref.dtype)

    return kernel


def mlp_forward(x, w1, b1, w2, b2, w3, b3, *, max_tile=128 * 1024):
    """x: (N, 3) f32. Weights in PyTorch (out, in) layout, biases (out, 1).

    Returns (N, 1) f32, matching nn.Linear semantics: y = x @ W.T + b.
    """
    n = x.shape[0]
    vmem_cap = _vmem_capacity_bytes()
    vmem_limit = min(96 * 1024 * 1024, int(0.75 * vmem_cap))   # ~48 MiB on v7x
    tb, cb, num_blocks = _choose_tiles(n, max_tile, vmem_limit)
    nchunks = tb // cb

    flops = 2 * n * (3 * 64 + 64 * 32 + 32 * 1)
    wbytes = sum(int(a.size) * 4 for a in (w1, b1, w2, b2, w3, b3))
    cost = pl.CostEstimate(flops=flops, transcendentals=0,
                           bytes_accessed=n * (3 + 1) * 4 + wbytes)

    # Weights / biases: constant index_map -> VMEM-resident across grid steps.
    resident = lambda shape: pl.BlockSpec(shape, lambda i: (0, 0))

    out = pl.pallas_call(
        _make_kernel(nchunks, cb),
        out_shape=jax.ShapeDtypeStruct((1, n), jnp.float32),
        grid=(num_blocks,),
        in_specs=[
            pl.BlockSpec((tb, 3), lambda i: (i, 0)),              # x rows, streamed
            resident((64, 3)),                                    # W1
            resident((64, 1)),                                    # b1
            resident((32, 64)),                                   # W2
            resident((32, 1)),                                    # b2
            resident((1, 32)),                                    # W3
            pl.BlockSpec(memory_space=pltpu.MemorySpace.SMEM),    # b3 scalar
        ],
        out_specs=pl.BlockSpec((1, tb), lambda i: (0, i)),        # lane-dense out
        compiler_params=pltpu.CompilerParams(
            dimension_semantics=("parallel",),
            vmem_limit_bytes=vmem_limit),
        cost_estimate=cost,
    )(x, w1, b1, w2, b2, w3, b3)

    # (1, N) -> (N, 1) is a pure row-major reshape (no data movement).
    return out.reshape(n, 1)


def init_params(key):
    """Deterministic init matching nn.Linear defaults and (out, in) layout."""
    ks = jax.random.split(key, 6)

    def linear_init(kw, kb, fan_in, fan_out):
        bound = 1.0 / float(fan_in) ** 0.5
        w = jax.random.uniform(kw, (fan_out, fan_in), jnp.float32, -bound, bound)
        b = jax.random.uniform(kb, (fan_out, 1), jnp.float32, -bound, bound)
        return w, b

    w1, b1 = linear_init(ks[0], ks[1], 3, 64)
    w2, b2 = linear_init(ks[2], ks[3], 64, 32)
    w3, b3 = linear_init(ks[4], ks[5], 32, 1)
    return w1, b1, w2, b2, w3, b3


def _reference(x, params):
    """Plain-JAX reference with PyTorch semantics (y = x @ W.T + b)."""
    w1, b1, w2, b2, w3, b3 = params
    h = jnp.maximum(x @ w1.T + b1[:, 0], 0.0)
    h = jnp.maximum(h @ w2.T + b2[:, 0], 0.0)
    return h @ w3.T + b3[:, 0]


if __name__ == "__main__":
    key = jax.random.PRNGKey(0)
    k_x1, k_x2, k_p = jax.random.split(key, 3)
    params = init_params(k_p)

    # Small batch -> exact single-block path (block shape == array shape).
    x_small = jax.random.normal(k_x1, (8, 3), dtype=jnp.float32)
    out_small = jax.block_until_ready(mlp_forward(x_small, *params))
    assert out_small.shape == (8, 1)
    assert jnp.allclose(out_small, _reference(x_small, params), atol=1e-5, rtol=1e-5)

    # Larger batch with a reduced tile -> streaming grid (2 steps) + 8-way
    # inner chunk loop, exercising the production code path at small scale.
    x_big = jax.random.normal(k_x2, (4096, 3), dtype=jnp.float32)
    out_big = jax.block_until_ready(mlp_forward(x_big, *params, max_tile=2048))
    assert out_big.shape == (4096, 1)
    assert jnp.allclose(out_big, _reference(x_big, params), atol=1e-5, rtol=1e-5)

    print("KERNEL_OK")
</pallas_src>

<mosaic_0001>
module attributes {stable_mosaic.version = 11 : i64} {
  func.func @kernel(%arg0: i32, %arg1: memref<8x3xf32, #tpu.memory_space<vmem>>, %arg2: memref<64x3xf32, #tpu.memory_space<vmem>>, %arg3: memref<64x1xf32, #tpu.memory_space<vmem>>, %arg4: memref<32x64xf32, #tpu.memory_space<vmem>>, %arg5: memref<32x1xf32, #tpu.memory_space<vmem>>, %arg6: memref<1x32xf32, #tpu.memory_space<vmem>>, %arg7: memref<1x1xf32, #tpu.memory_space<smem>>, %arg8: memref<1x8xf32, #tpu.memory_space<vmem>>) attributes {dimension_semantics = [#tpu.dimension_semantics<parallel>], iteration_bounds = array<i64: 1>, scalar_prefetch = 0 : i64, scratch_operands = 0 : i64, tpu.core_type = #tpu.core_type<tc>, window_params = [{transform_indices = @transform_0, window_bounds = array<i64: 8, 3>}, {pipeline_mode = #tpu.pipeline_mode<synchronous>, transform_indices = @transform_1, window_bounds = array<i64: 64, 3>}, {pipeline_mode = #tpu.pipeline_mode<synchronous>, transform_indices = @transform_2, window_bounds = array<i64: 64, 1>}, {pipeline_mode = #tpu.pipeline_mode<synchronous>, transform_indices = @transform_3, window_bounds = array<i64: 32, 64>}, {pipeline_mode = #tpu.pipeline_mode<synchronous>, transform_indices = @transform_4, window_bounds = array<i64: 32, 1>}, {pipeline_mode = #tpu.pipeline_mode<synchronous>, transform_indices = @transform_5, window_bounds = array<i64: 1, 32>}, {transform_indices = @transform_6, window_bounds = array<i64: 1, 1>}, {transform_indices = @transform_7, window_bounds = array<i64: 1, 8>}]} {
    %c0 = arith.constant 0 : index
    %c0_0 = arith.constant 0 : index
    %0 = vector.load %arg2[%c0, %c0_0] : memref<64x3xf32, #tpu.memory_space<vmem>>, vector<64x3xf32>
    %c0_1 = arith.constant 0 : index
    %c0_2 = arith.constant 0 : index
    %1 = vector.load %arg3[%c0_1, %c0_2] : memref<64x1xf32, #tpu.memory_space<vmem>>, vector<64x1xf32>
    %c0_3 = arith.constant 0 : index
    %c0_4 = arith.constant 0 : index
    %2 = vector.load %arg4[%c0_3, %c0_4] : memref<32x64xf32, #tpu.memory_space<vmem>>, vector<32x64xf32>
    %c0_5 = arith.constant 0 : index
    %c0_6 = arith.constant 0 : index
    %3 = vector.load %arg5[%c0_5, %c0_6] : memref<32x1xf32, #tpu.memory_space<vmem>>, vector<32x1xf32>
    %c0_7 = arith.constant 0 : index
    %c0_8 = arith.constant 0 : index
    %4 = vector.load %arg6[%c0_7, %c0_8] : memref<1x32xf32, #tpu.memory_space<vmem>>, vector<1x32xf32>
    %c0_9 = arith.constant 0 : index
    %c0_10 = arith.constant 0 : index
    %5 = memref.load %arg7[%c0_9, %c0_10] : memref<1x1xf32, #tpu.memory_space<smem>>
    %c0_11 = arith.constant 0 : index
    %c0_12 = arith.constant 0 : index
    %6 = vector.load %arg1[%c0_11, %c0_12] : memref<8x3xf32, #tpu.memory_space<vmem>>, vector<8x3xf32>
    %cst = arith.constant dense<0.000000e+00> : vector<64x8xf32>
    %7 = tpu.matmul %0, %6, %cst {dimension_numbers = #tpu.dot_dimension_numbers<[1], [1], [0], [0], [0, 0, 1, 0], [], []>} : vector<64x3xf32>, vector<8x3xf32>, vector<64x8xf32> -> vector<64x8xf32>
    %8 = vector.broadcast %1 : vector<64x1xf32> to vector<64x8xf32>
    %9 = arith.addf %7, %8 : vector<64x8xf32>
    %cst_13 = arith.constant 0.000000e+00 : f32
    %10 = vector.broadcast %cst_13 : f32 to vector<64x8xf32>
    %11 = arith.maximumf %9, %10 : vector<64x8xf32>
    %cst_14 = arith.constant dense<0.000000e+00> : vector<32x8xf32>
    %12 = tpu.matmul %2, %11, %cst_14 {dimension_numbers = #tpu.dot_dimension_numbers<[1], [0], [0], [1], [0, 0, 1, 1], [], []>} : vector<32x64xf32>, vector<64x8xf32>, vector<32x8xf32> -> vector<32x8xf32>
    %13 = vector.broadcast %3 : vector<32x1xf32> to vector<32x8xf32>
    %14 = arith.addf %12, %13 : vector<32x8xf32>
    %cst_15 = arith.constant 0.000000e+00 : f32
    %15 = vector.broadcast %cst_15 : f32 to vector<32x8xf32>
    %16 = arith.maximumf %14, %15 : vector<32x8xf32>
    %cst_16 = arith.constant dense<0.000000e+00> : vector<1x8xf32>
    %17 = tpu.matmul %4, %16, %cst_16 {dimension_numbers = #tpu.dot_dimension_numbers<[1], [0], [0], [1], [0, 0, 1, 1], [], []>} : vector<1x32xf32>, vector<32x8xf32>, vector<1x8xf32> -> vector<1x8xf32>
    %18 = vector.broadcast %5 : f32 to vector<1x8xf32>
    %19 = arith.addf %17, %18 : vector<1x8xf32>
    %c0_17 = arith.constant 0 : index
    %c0_18 = arith.constant 0 : index
    %20 = vector.load %arg8[%c0_17, %c0_18] : memref<1x8xf32, #tpu.memory_space<vmem>>, vector<1x8xf32>
    tpu.vector_store %arg8[%c0_17, %c0_18], %19 {strides = array<i32>} : memref<1x8xf32, #tpu.memory_space<vmem>>, vector<1x8xf32>,
    return
  }
  func.func @transform_0(%arg0: i32) -> (i32, i32) {
    %c0_i32 = arith.constant 0 : i32
    %c0_i32_0 = arith.constant 0 : i32
    return %arg0, %c0_i32 : i32, i32
  }
  func.func @transform_1(%arg0: i32) -> (i32, i32) {
    %c0_i32 = arith.constant 0 : i32
    %c0_i32_0 = arith.constant 0 : i32
    %c0_i32_1 = arith.constant 0 : i32
    return %c0_i32, %c0_i32_0 : i32, i32
  }
  func.func @transform_2(%arg0: i32) -> (i32, i32) {
    %c0_i32 = arith.constant 0 : i32
    %c0_i32_0 = arith.constant 0 : i32
    %c0_i32_1 = arith.constant 0 : i32
    return %c0_i32, %c0_i32_0 : i32, i32
  }
  func.func @transform_3(%arg0: i32) -> (i32, i32) {
    %c0_i32 = arith.constant 0 : i32
    %c0_i32_0 = arith.constant 0 : i32
    %c0_i32_1 = arith.constant 0 : i32
    return %c0_i32, %c0_i32_0 : i32, i32
  }
  func.func @transform_4(%arg0: i32) -> (i32, i32) {
    %c0_i32 = arith.constant 0 : i32
    %c0_i32_0 = arith.constant 0 : i32
    %c0_i32_1 = arith.constant 0 : i32
    return %c0_i32, %c0_i32_0 : i32, i32
  }
  func.func @transform_5(%arg0: i32) -> (i32, i32) {
    %c0_i32 = arith.constant 0 : i32
    %c0_i32_0 = arith.constant 0 : i32
    %c0_i32_1 = arith.constant 0 : i32
    return %c0_i32, %c0_i32_0 : i32, i32
  }
  func.func @transform_6(%arg0: i32) -> (i32, i32) {
    %c0_i32 = arith.constant 0 : i32
    %c0_i32_0 = arith.constant 0 : i32
    %c0_i32_1 = arith.constant 0 : i32
    return %c0_i32, %c0_i32_0 : i32, i32
  }
  func.func @transform_7(%arg0: i32) -> (i32, i32) {
    %c0_i32 = arith.constant 0 : i32
    %c0_i32_0 = arith.constant 0 : i32
    return %c0_i32, %arg0 : i32, i32
  }
}

</mosaic_0001>

<llo_original>
// kernel: tpu_custom_call.1
$region0: #{tpu_custom_call.1}
  #allocation0 [shape = 'u32[]', space=smem, size = 0x4, offset = 0x4, fixed_abs, tag = 'smem constant byte address 0x4 - core index']
  #allocation1 [shape = 'u32[144,128]{1,0:T(1,128)}', space=vmem, size = 0x12000, scoped, tag = 'internal scratch']
  #allocation2 [shape = 'f32[1,1]{1,0:T(1,128)S(6)}', space=smem, size = 0x200, scoped, tag = 'scoped memory for tpu_custom_call.1']
  %s0 = inlined_call_operand.vmem [shape: f32[8,3], index: 0, kind: input, shape index: {}]
  %s1 = inlined_call_operand.vmem [shape: f32[64,3], index: 1, kind: input, shape index: {}]
  %s2 = inlined_call_operand.vmem [shape: f32[64,1], index: 2, kind: input, shape index: {}]
  %s3 = inlined_call_operand.vmem [shape: f32[32,64], index: 3, kind: input, shape index: {}]
  %s4 = inlined_call_operand.vmem [shape: f32[32,1], index: 4, kind: input, shape index: {}]
  %s5 = inlined_call_operand.vmem [shape: f32[1,32], index: 5, kind: input, shape index: {}]
  %s6 = inlined_call_operand.<no memory space> [shape: f32[1,1], index: 6, kind: input, shape index: {}]
  %s7 = inlined_call_operand.hbm [shape: f32[1,8], index: 7, kind: output, shape index: {}]
  %s8 = sld [smem:[#allocation0]]
  $region38: #{tpu_custom_call.1} parent=0
    _
  %s10 = ssub.s32 1, %s8
  %s11 = scalar_select 0, %s10, %s8
  %12 = sst [smem:[#allocation2]] %s6
  $region1: #{tpu_custom_call.1} parent=0
    #allocation3 [shape = 'u8[512]{0}', space=vmem, size = 0x400, scoped, tag = 'output window, operand 0, single buffered']
    #allocation4 [shape = 's32[1]{0}', space=sflag, size = 0x4, scoped, tag = 'scoped memory for tpu_custom_call.1']
    %13 = vsyncpa [#allocation4], 0
    // Predicated region
    $region2: #{tpu_custom_call.1} parent=1 // pred_check
      _
    $region3: #{tpu_custom_call.1} parent=1 // pred_check_branch
      %15 = sbr.rel (0) target = $region5
    $region4: #{tpu_custom_call.1} parent=1 // pred_region
      _
    $region5: #{tpu_custom_call.1} parent=1 // pred_fallthru
      _
    // Predicated region
    $region6: #{tpu_custom_call.1} parent=1 // pred_check
      _
    $region7: #{tpu_custom_call.1} parent=1 // pred_check_branch
      %17 = sbr.rel (0) target = $region9
    $region8: #{tpu_custom_call.1} parent=1 // pred_region
      _
    $region9: #{tpu_custom_call.1} parent=1 // pred_fallthru
      _
    // Predicated region
    $region10: #{tpu_custom_call.1} parent=1 // pred_check
      _
    $region11: #{tpu_custom_call.1} parent=1 // pred_check_branch
      %19 = sbr.rel (0) target = $region13
    $region12: #{tpu_custom_call.1} parent=1 // pred_region
      _
    $region13: #{tpu_custom_call.1} parent=1 // pred_fallthru
      _
    // Predicated region
    $region14: #{tpu_custom_call.1} parent=1 // pred_check
      _
    $region15: #{tpu_custom_call.1} parent=1 // pred_check_branch
      %21 = sbr.rel (0) target = $region17
    $region16: #{tpu_custom_call.1} parent=1 // pred_region
      _
    $region17: #{tpu_custom_call.1} parent=1 // pred_fallthru
      _
    // Predicated region
    $region18: #{tpu_custom_call.1} parent=1 // pred_check
      _
    $region19: #{tpu_custom_call.1} parent=1 // pred_check_branch
      %23 = sbr.rel (0) target = $region21
    $region20: #{tpu_custom_call.1} parent=1 // pred_region
      _
    $region21: #{tpu_custom_call.1} parent=1 // pred_fallthru
      _
    // Predicated region
    $region22: #{tpu_custom_call.1} parent=1 // pred_check
      _
    $region23: #{tpu_custom_call.1} parent=1 // pred_check_branch
      %25 = sbr.rel (0) target = $region25
    $region24: #{tpu_custom_call.1} parent=1 // pred_region
      _
    $region25: #{tpu_custom_call.1} parent=1 // pred_fallthru
      _
    // Predicated region
    $region26: #{tpu_custom_call.1} parent=1 // pred_check
      _
    $region27: #{tpu_custom_call.1} parent=1 // pred_check_branch
      %27 = sbr.rel (0) target = $region29
    $region28: #{tpu_custom_call.1} parent=1 // pred_region
      _
    $region29: #{tpu_custom_call.1} parent=1 // pred_fallthru
      _
    %v28 = vld [vmem:[%s1] sm:$0xff]
    %v29 = vld [vmem:[%s1 + $0x8] sm:$0xff]
    %v30 = vld [vmem:[%s1 + $0x10] sm:$0xff]
    %v31 = vld [vmem:[%s1 + $0x18] sm:$0xff]
    %v32 = vld [vmem:[%s1 + $0x20] sm:$0xff]
    %v33 = vld [vmem:[%s1 + $0x28] sm:$0xff]
    %v34 = vld [vmem:[%s1 + $0x30] sm:$0xff]
    %v35 = vld [vmem:[%s1 + $0x38] sm:$0xff]
    %v36 = vld [vmem:[%s2] sm:$0xff]
    %v37 = vld [vmem:[%s2 + $0x8] sm:$0xff]
    %v38 = vld [vmem:[%s2 + $0x10] sm:$0xff]
    %v39 = vld [vmem:[%s2 + $0x18] sm:$0xff]
    %v40 = vld [vmem:[%s2 + $0x20] sm:$0xff]
    %v41 = vld [vmem:[%s2 + $0x28] sm:$0xff]
    %v42 = vld [vmem:[%s2 + $0x30] sm:$0xff]
    %v43 = vld [vmem:[%s2 + $0x38] sm:$0xff]
    %v44 = vld [vmem:[%s3] sm:$0xff]
    %v45 = vld [vmem:[%s3 + $0x8] sm:$0xff]
    %v46 = vld [vmem:[%s3 + $0x10] sm:$0xff]
    %v47 = vld [vmem:[%s3 + $0x18] sm:$0xff]
    %v48 = vld [vmem:[%s4] sm:$0xff]
    %v49 = vld [vmem:[%s4 + $0x8] sm:$0xff]
    %v50 = vld [vmem:[%s4 + $0x10] sm:$0xff]
    %v51 = vld [vmem:[%s4 + $0x18] sm:$0xff]
    %v52 = vld [vmem:[%s5] sm:$0x1]
    %s53 = sld [smem:[#allocation2]]
    %v54 = vld [vmem:[%s0] sm:$0xff]
    %56 = vset.pattern.permute.xlu0 0
    %57 = vperm.xlu0 %56, %v36
    %v58 = vpop.permute.xlu0 %57
    %61 = vset.pattern.permute.xlu0 0
    %62 = vperm.xlu0 %61, %v37
    %v63 = vpop.permute.xlu0 %62
    %66 = vset.pattern.permute.xlu0 0
    %67 = vperm.xlu0 %66, %v38
    %v68 = vpop.permute.xlu0 %67
    %71 = vset.pattern.permute.xlu0 0
    %72 = vperm.xlu0 %71, %v39
    %v73 = vpop.permute.xlu0 %72
    %76 = vset.pattern.permute.xlu0 0
    %77 = vperm.xlu0 %76, %v40
    %v78 = vpop.permute.xlu0 %77
    %81 = vset.pattern.permute.xlu0 0
    %82 = vperm.xlu0 %81, %v41
    %v83 = vpop.permute.xlu0 %82
    %86 = vset.pattern.permute.xlu0 0
    %87 = vperm.xlu0 %86, %v42
    %v88 = vpop.permute.xlu0 %87
    %91 = vset.pattern.permute.xlu0 0
    %92 = vperm.xlu0 %91, %v43
    %v93 = vpop.permute.xlu0 %92
    %vm95 = vcmask 23552
    %v97 = vsel %vm95, %v28, 0
    %v100 = vsel %vm95, %v29, 0
    %v103 = vsel %vm95, %v30, 0
    %v106 = vsel %vm95, %v31, 0
    %v109 = vsel %vm95, %v32, 0
    %v112 = vsel %vm95, %v33, 0
    %v115 = vsel %vm95, %v34, 0
    %v118 = vsel %vm95, %v35, 0
    %v121 = vsel %vm95, %v54, 0
    %123 = vmatprep.subr.mxu0 0.0
    %124 = vmatpush1.xpose.msra.mxu0 0.0
    %125 = vmatprep.subr.mxu0 0.0
    %126 = vmatpush1.xpose.msra.mxu0 0.0
    %127 = vmatprep.subr.mxu0 0.0
    %128 = vmatpush1.xpose.msra.mxu0 0.0
    %129 = vmatprep.subr.mxu0 0.0
    %130 = vmatpush1.xpose.msra.mxu0 0.0
    %131 = vmatprep.subr.mxu0 0.0
    %132 = vmatpush1.xpose.msra.mxu0 0.0
    %133 = vmatprep.subr.mxu0 0.0
    %134 = vmatpush1.xpose.msra.mxu0 0.0
    %135 = vmatprep.subr.mxu0 0.0
    %136 = vmatpush1.xpose.msra.mxu0 0.0
    %137 = vmatprep.subr.mxu0 0.0
    %138 = vmatpush1.xpose.msra.mxu0 0.0
    %139 = vmatprep.subr.mxu0 0.0
    %140 = vmatpush1.xpose.msra.mxu0 0.0
    %141 = vmatprep.subr.mxu0 0.0
    %142 = vmatpush1.xpose.msra.mxu0 0.0
    %143 = vmatprep.subr.mxu0 0.0
    %144 = vmatpush1.xpose.msra.mxu0 0.0
    %145 = vmatprep.subr.mxu0 0.0
    %146 = vmatpush1.xpose.msra.mxu0 0.0
    %147 = vmatprep.subr.mxu0 0.0
    %148 = vmatpush1.xpose.msra.mxu0 0.0
    %149 = vmatprep.subr.mxu0 0.0
    %150 = vmatpush1.xpose.msra.mxu0 0.0
    %151 = vmatprep.subr.mxu0 0.0
    %152 = vmatpush1.xpose.msra.mxu0 0.0
    %153 = vmatprep.subr.mxu0 0.0
    %154 = vmatpush1.xpose.msra.mxu0 %v121
    %155 = vmatprep.subr.mxu0 0.0
    %156 = vmatpush2.xpose.msra.mxu0 0.0
    %157 = vmatprep.subr.mxu0 0.0
    %158 = vmatpush2.xpose.msra.mxu0 0.0
    %159 = vmatprep.subr.mxu0 0.0
    %160 = vmatpush2.xpose.msra.mxu0 0.0
    %161 = vmatprep.subr.mxu0 0.0
    %162 = vmatpush2.xpose.msra.mxu0 0.0
    %163 = vmatprep.subr.mxu0 0.0
    %164 = vmatpush2.xpose.msra.mxu0 0.0
    %165 = vmatprep.subr.mxu0 0.0
    %166 = vmatpush2.xpose.msra.mxu0 0.0
    %167 = vmatprep.subr.mxu0 0.0
    %168 = vmatpush2.xpose.msra.mxu0 0.0
    %169 = vmatprep.subr.mxu0 0.0
    %170 = vmatpush2.xpose.msra.mxu0 0.0
    %171 = vmatprep.subr.mxu0 0.0
    %172 = vmatpush2.xpose.msra.mxu0 0.0
    %173 = vmatprep.subr.mxu0 0.0
    %174 = vmatpush2.xpose.msra.mxu0 0.0
    %175 = vmatprep.subr.mxu0 0.0
    %176 = vmatpush2.xpose.msra.mxu0 0.0
    %177 = vmatprep.subr.mxu0 0.0
    %178 = vmatpush2.xpose.msra.mxu0 0.0
    %179 = vmatprep.subr.mxu0 0.0
    %180 = vmatpush2.xpose.msra.mxu0 0.0
    %181 = vmatprep.subr.mxu0 0.0
    %182 = vmatpush2.xpose.msra.mxu0 0.0
    %183 = vmatprep.subr.mxu0 0.0
    %184 = vmatpush2.xpose.msra.mxu0 0.0
    %185 = vmatprep.subr.mxu0 0.0
    %186 = vmatpush2.xpose.msra.mxu0 0.0
    %187 = vmatprep.mubr.f32.mxu0 0.0
    %188 = vmatmul.mubr.f32.gmra.mxu0 %v97
    %v189 = vpop.f32.mrf.mxu0
    %v190 = vadd.f32 %v58, %v189
    %v191 = vpop.f32.mrf.mxu0
    %192 = vmatprep.mubr.f32.mxu0 0.0
    %193 = vmatmul.mubr.f32.gmra.mxu0 %v100
    %v194 = vpop.f32.mrf.mxu0
    %v195 = vadd.f32 %v63, %v194
    %v196 = vpop.f32.mrf.mxu0
    %197 = vmatprep.mubr.f32.mxu0 0.0
    %198 = vmatmul.mubr.f32.gmra.mxu0 %v103
    %v199 = vpop.f32.mrf.mxu0
    %v200 = vadd.f32 %v68, %v199
    %v201 = vpop.f32.mrf.mxu0
    %202 = vmatprep.mubr.f32.mxu0 0.0
    %203 = vmatmul.mubr.f32.gmra.mxu0 %v106
    %v204 = vpop.f32.mrf.mxu0
    %v205 = vadd.f32 %v73, %v204
    %v206 = vpop.f32.mrf.mxu0
    %207 = vmatprep.mubr.f32.mxu0 0.0
    %208 = vmatmul.mubr.f32.gmra.mxu0 %v109
    %v209 = vpop.f32.mrf.mxu0
    %v210 = vadd.f32 %v78, %v209
    %v211 = vpop.f32.mrf.mxu0
    %212 = vmatprep.mubr.f32.mxu0 0.0
    %213 = vmatmul.mubr.f32.gmra.mxu0 %v112
    %v214 = vpop.f32.mrf.mxu0
    %v215 = vadd.f32 %v83, %v214
    %v216 = vpop.f32.mrf.mxu0
    %217 = vmatprep.mubr.f32.mxu0 0.0
    %218 = vmatmul.mubr.f32.gmra.mxu0 %v115
    %v219 = vpop.f32.mrf.mxu0
    %v220 = vadd.f32 %v88, %v219
    %v221 = vpop.f32.mrf.mxu0
    %222 = vmatprep.mubr.f32.mxu0 0.0
    %223 = vmatmul.mubr.f32.gmra.mxu0 %v118
    %v224 = vpop.f32.mrf.mxu0
    %v225 = vadd.f32 %v93, %v224
    %v226 = vpop.f32.mrf.mxu0
    %227 = vdwg.mxu0
    %v228 = vmax.f32 %v190, 0.0
    %v229 = vmax.f32 %v195, 0.0
    %v230 = vmax.f32 %v200, 0.0
    %v231 = vmax.f32 %v205, 0.0
    %v232 = vmax.f32 %v210, 0.0
    %v233 = vmax.f32 %v215, 0.0
    %v234 = vmax.f32 %v220, 0.0
    %v235 = vmax.f32 %v225, 0.0
    %237 = vset.pattern.permute.xlu0 0
    %238 = vperm.xlu0 %237, %v48
    %v239 = vpop.permute.xlu0 %238
    %242 = vset.pattern.permute.xlu0 0
    %243 = vperm.xlu0 %242, %v49
    %v244 = vpop.permute.xlu0 %243
    %247 = vset.pattern.permute.xlu0 0
    %248 = vperm.xlu0 %247, %v50
    %v249 = vpop.permute.xlu0 %248
    %252 = vset.pattern.permute.xlu0 0
    %253 = vperm.xlu0 %252, %v51
    %v254 = vpop.permute.xlu0 %253
    %vm256 = vcmask 523264
    %v258 = vsel %vm256, %v44, 0
    %v261 = vsel %vm256, %v45, 0
    %v264 = vsel %vm256, %v46, 0
    %v267 = vsel %vm256, %v47, 0
    %269 = vmatprep.subr.mxu0 0.0
    %270 = vmatpush1.msra.mxu0 0.0
    %271 = vmatprep.subr.mxu0 0.0
    %272 = vmatpush1.msra.mxu0 0.0
    %273 = vmatprep.subr.mxu0 0.0
    %274 = vmatpush1.msra.mxu0 0.0
    %275 = vmatprep.subr.mxu0 0.0
    %276 = vmatpush1.msra.mxu0 0.0
    %277 = vmatprep.subr.mxu0 0.0
    %278 = vmatpush1.msra.mxu0 0.0
    %279 = vmatprep.subr.mxu0 0.0
    %280 = vmatpush1.msra.mxu0 0.0
    %281 = vmatprep.subr.mxu0 0.0
    %282 = vmatpush1.msra.mxu0 0.0
    %283 = vmatprep.subr.mxu0 0.0
    %284 = vmatpush1.msra.mxu0 0.0
    %285 = vmatprep.subr.mxu0 0.0
    %286 = vmatpush1.msra.mxu0 %v235
    %287 = vmatprep.subr.mxu0 0.0
    %288 = vmatpush1.msra.mxu0 %v234
    %289 = vmatprep.subr.mxu0 0.0
    %290 = vmatpush1.msra.mxu0 %v233
    %291 = vmatprep.subr.mxu0 0.0
    %292 = vmatpush1.msra.mxu0 %v232
    %293 = vmatprep.subr.mxu0 0.0
    %294 = vmatpush1.msra.mxu0 %v231
    %295 = vmatprep.subr.mxu0 0.0
    %296 = vmatpush1.msra.mxu0 %v230
    %297 = vmatprep.subr.mxu0 0.0
    %298 = vmatpush1.msra.mxu0 %v229
    %299 = vmatprep.subr.mxu0 0.0
    %300 = vmatpush1.msra.mxu0 %v228
    %301 = vmatprep.subr.mxu0 0.0
    %302 = vmatpush2.msra.mxu0 0.0
    %303 = vmatprep.subr.mxu0 0.0
    %304 = vmatpush2.msra.mxu0 0.0
    %305 = vmatprep.subr.mxu0 0.0
    %306 = vmatpush2.msra.mxu0 0.0
    %307 = vmatprep.subr.mxu0 0.0
    %308 = vmatpush2.msra.mxu0 0.0
    %309 = vmatprep.subr.mxu0 0.0
    %310 = vmatpush2.msra.mxu0 0.0
    %311 = vmatprep.subr.mxu0 0.0
    %312 = vmatpush2.msra.mxu0 0.0
    %313 = vmatprep.subr.mxu0 0.0
    %314 = vmatpush2.msra.mxu0 0.0
    %315 = vmatprep.subr.mxu0 0.0
    %316 = vmatpush2.msra.mxu0 0.0
    %317 = vmatprep.subr.mxu0 0.0
    %318 = vmatpush2.msra.mxu0 0.0
    %319 = vmatprep.subr.mxu0 0.0
    %320 = vmatpush2.msra.mxu0 0.0
    %321 = vmatprep.subr.mxu0 0.0
    %322 = vmatpush2.msra.mxu0 0.0
    %323 = vmatprep.subr.mxu0 0.0
    %324 = vmatpush2.msra.mxu0 0.0
    %325 = vmatprep.subr.mxu0 0.0
    %326 = vmatpush2.msra.mxu0 0.0
    %327 = vmatprep.subr.mxu0 0.0
    %328 = vmatpush2.msra.mxu0 0.0
    %329 = vmatprep.subr.mxu0 0.0
    %330 = vmatpush2.msra.mxu0 0.0
    %331 = vmatprep.subr.mxu0 0.0
    %332 = vmatpush2.msra.mxu0 0.0
    %333 = vmatprep.mubr.f32.mxu0 0.0
    %334 = vmatmul.mubr.f32.gmra.mxu0 %v258
    %v335 = vpop.f32.mrf.mxu0
    %v336 = vadd.f32 %v239, %v335
    %v337 = vpop.f32.mrf.mxu0
    %338 = vmatprep.mubr.f32.mxu0 0.0
    %339 = vmatmul.mubr.f32.gmra.mxu0 %v261
    %v340 = vpop.f32.mrf.mxu0
    %v341 = vadd.f32 %v244, %v340
    %v342 = vpop.f32.mrf.mxu0
    %343 = vmatprep.mubr.f32.mxu0 0.0
    %344 = vmatmul.mubr.f32.gmra.mxu0 %v264
    %v345 = vpop.f32.mrf.mxu0
    %v346 = vadd.f32 %v249, %v345
    %v347 = vpop.f32.mrf.mxu0
    %348 = vmatprep.mubr.f32.mxu0 0.0
    %349 = vmatmul.mubr.f32.gmra.mxu0 %v267
    %v350 = vpop.f32.mrf.mxu0
    %v351 = vadd.f32 %v254, %v350
    %v352 = vpop.f32.mrf.mxu0
    %353 = vdwg.mxu0
    %v354 = vmax.f32 %v336, 0.0
    %v355 = vmax.f32 %v341, 0.0
    %v356 = vmax.f32 %v346, 0.0
    %v357 = vmax.f32 %v351, 0.0
    %v358 = vstv %s53
    %vm359 = vcmask 261120
    %v361 = vsel %vm359, %v52, 0
    %363 = vmatprep.subr.mxu0 0.0
    %364 = vmatpush1.msra.mxu0 0.0
    %365 = vmatprep.subr.mxu0 0.0
    %366 = vmatpush1.msra.mxu0 0.0
    %367 = vmatprep.subr.mxu0 0.0
    %368 = vmatpush1.msra.mxu0 0.0
    %369 = vmatprep.subr.mxu0 0.0
    %370 = vmatpush1.msra.mxu0 0.0
    %371 = vmatprep.subr.mxu0 0.0
    %372 = vmatpush1.msra.mxu0 0.0
    %373 = vmatprep.subr.mxu0 0.0
    %374 = vmatpush1.msra.mxu0 0.0
    %375 = vmatprep.subr.mxu0 0.0
    %376 = vmatpush1.msra.mxu0 0.0
    %377 = vmatprep.subr.mxu0 0.0
    %378 = vmatpush1.msra.mxu0 0.0
    %379 = vmatprep.subr.mxu0 0.0
    %380 = vmatpush1.msra.mxu0 0.0
    %381 = vmatprep.subr.mxu0 0.0
    %382 = vmatpush1.msra.mxu0 0.0
    %383 = vmatprep.subr.mxu0 0.0
    %384 = vmatpush1.msra.mxu0 0.0
    %385 = vmatprep.subr.mxu0 0.0
    %386 = vmatpush1.msra.mxu0 0.0
    %387 = vmatprep.subr.mxu0 0.0
    %388 = vmatpush1.msra.mxu0 %v357
    %389 = vmatprep.subr.mxu0 0.0
    %390 = vmatpush1.msra.mxu0 %v356
    %391 = vmatprep.subr.mxu0 0.0
    %392 = vmatpush1.msra.mxu0 %v355
    %393 = vmatprep.subr.mxu0 0.0
    %394 = vmatpush1.msra.mxu0 %v354
    %395 = vmatprep.subr.mxu0 0.0
    %396 = vmatpush2.msra.mxu0 0.0
    %397 = vmatprep.subr.mxu0 0.0
    %398 = vmatpush2.msra.mxu0 0.0
    %399 = vmatprep.subr.mxu0 0.0
    %400 = vmatpush2.msra.mxu0 0.0
    %401 = vmatprep.subr.mxu0 0.0
    %402 = vmatpush2.msra.mxu0 0.0
    %403 = vmatprep.subr.mxu0 0.0
    %404 = vmatpush2.msra.mxu0 0.0
    %405 = vmatprep.subr.mxu0 0.0
    %406 = vmatpush2.msra.mxu0 0.0
    %407 = vmatprep.subr.mxu0 0.0
    %408 = vmatpush2.msra.mxu0 0.0
    %409 = vmatprep.subr.mxu0 0.0
    %410 = vmatpush2.msra.mxu0 0.0
    %411 = vmatprep.subr.mxu0 0.0
    %412 = vmatpush2.msra.mxu0 0.0
    %413 = vmatprep.subr.mxu0 0.0
    %414 = vmatpush2.msra.mxu0 0.0
    %415 = vmatprep.subr.mxu0 0.0
    %416 = vmatpush2.msra.mxu0 0.0
    %417 = vmatprep.subr.mxu0 0.0
    %418 = vmatpush2.msra.mxu0 0.0
    %419 = vmatprep.subr.mxu0 0.0
    %420 = vmatpush2.msra.mxu0 0.0
    %421 = vmatprep.subr.mxu0 0.0
    %422 = vmatpush2.msra.mxu0 0.0
    %423 = vmatprep.subr.mxu0 0.0
    %424 = vmatpush2.msra.mxu0 0.0
    %425 = vmatprep.subr.mxu0 0.0
    %426 = vmatpush2.msra.mxu0 0.0
    %427 = vmatprep.mubr.f32.mxu0 0.0
    %428 = vmatmul.mubr.f32.gmra.mxu0 %v361
    %v429 = vpop.f32.mrf.mxu0
    %v430 = vadd.f32 %v358, %v429
    %v431 = vpop.f32.mrf.mxu0
    %432 = vdwg.mxu0
    %vm433 = vcmask 57344
    %434 = vst.msk [vmem:[#allocation3] sm:$0x1] %vm433, %v430
    // Predicated region
    $region30: #{tpu_custom_call.1} parent=1 // pred_check
      _
    $region31: #{tpu_custom_call.1} parent=1 // pred_check_branch
      %436 = sbr.rel (0) target = $region33
    $region32: #{tpu_custom_call.1} parent=1 // pred_region
      %s438 = ssub.s32 16, 16
      %439 = vsyncadd [#allocation4], %s438
      %s441 = sshll.u32 [#allocation3], 4
      %s442 = int_to_ptr.vmem [resolvable:$true] %s441
      %444 = dma.vmem_to_hbm [thread:$0]  %s442, 16, %s7, [#allocation4]
    $region33: #{tpu_custom_call.1} parent=1 // pred_fallthru
      _
    // Predicated region
    $region34: #{tpu_custom_call.1} parent=1 // pred_check
      _
    $region35: #{tpu_custom_call.1} parent=1 // pred_check_branch
      %446 = sbr.rel (0) target = $region37
    $region36: #{tpu_custom_call.1} parent=1 // pred_region
      %447 = dma.done [#allocation4], 16
    $region37: #{tpu_custom_call.1} parent=1 // pred_fallthru
      _
    %448 = vsyncpa [#allocation4], 1

</llo_original>
